<compile_context>
chip_gen: v7x
topology: tpu7x:2x2x1
jax: 0.10.0
libtpu: 0.0.40
codegen_flags: <defaults>
</compile_context>

<pallas_src>
import functools

import jax
import jax.numpy as jnp
from jax.experimental import pallas as pl
from jax.experimental.pallas import tpu as pltpu


def _round_up(v, m):
    return (v + m - 1) // m * m


def _cdiv(a, b):
    return -(-a // b)


def _vmem_capacity_bytes():
    """Physical VMEM per core; conservative 64 MiB (v7x) if the query fails."""
    try:
        cap = int(getattr(pltpu.get_tpu_info(), "vmem_capacity_bytes", 0))
        if cap > 0:
            return cap
    except Exception:  # hardware query is best-effort only
        pass
    return 64 * 1024 * 1024


# ---------------------------------------------------------------------------
# Kernels
# ---------------------------------------------------------------------------
def fewshot_kernel(x_ref, wb_ref, bb_ref, wc_ref, bc_ref, out_ref, *, relu):
    """Single-shot path: backbone matmul + (relu) + l2-normalize + classifier.

    x_ref : [TB, K]   f32 flattened-input tile (bf16 cast in-register)
    wb_ref: [K,  Dp]  bf16 backbone weight (D zero-padded to 128)
    bb_ref: [1,  Dp]  f32  backbone bias   (zero-padded)
    wc_ref: [Dp, NCp] bf16 classifier W^T  (zero-padded)
    bc_ref: [1,  NCp] f32  classifier bias (zero-padded)
    out_ref:[TB, NCp] f32  logits (padded cols are exactly 0)
    """
    feat = jnp.dot(x_ref[...].astype(jnp.bfloat16), wb_ref[...],
                   preferred_element_type=jnp.float32) + bb_ref[...]
    if relu:
        feat = jnp.maximum(feat, 0.0)
    # x / max(||x||, 1e-12) == x * rsqrt(max(||x||^2, 1e-24)); one EUP rsqrt.
    # Padded D lanes are exactly 0 (zero weight cols + zero bias), so the norm
    # and the second matmul are unaffected by the padding.
    sq = jnp.sum(feat * feat, axis=-1, keepdims=True)
    feat = feat * jax.lax.rsqrt(jnp.maximum(sq, 1e-24))
    out = jnp.dot(feat.astype(wc_ref.dtype), wc_ref[...],
                  preferred_element_type=jnp.float32) + bc_ref[...]
    out_ref[...] = out.astype(out_ref.dtype)


def fewshot_kernel_ksplit(x_ref, wb_ref, bb_ref, wc_ref, bc_ref, out_ref,
                          acc_ref, *, relu, K, tile_k):
    """K-split path (large backbones): f32 VMEM accumulator over K grid axis."""
    k = pl.program_id(1)

    @pl.when(k == 0)
    def _init():
        acc_ref[...] = jnp.zeros_like(acc_ref)

    x_t = x_ref[...]
    if K % tile_k != 0:
        # Last K tile is ragged: zero the out-of-bounds columns (wb is
        # zero-padded along K so the products contribute exactly 0).
        col = jax.lax.broadcasted_iota(jnp.int32, x_t.shape, 1)
        x_t = jnp.where(col < (K - k * tile_k), x_t, 0.0)
    acc_ref[...] += jnp.dot(x_t.astype(jnp.bfloat16), wb_ref[...],
                            preferred_element_type=jnp.float32)

    @pl.when(k == pl.num_programs(1) - 1)
    def _finalize():
        feat = acc_ref[...] + bb_ref[...]
        if relu:
            feat = jnp.maximum(feat, 0.0)
        sq = jnp.sum(feat * feat, axis=-1, keepdims=True)
        feat = feat * jax.lax.rsqrt(jnp.maximum(sq, 1e-24))
        out = jnp.dot(feat.astype(wc_ref.dtype), wc_ref[...],
                      preferred_element_type=jnp.float32) + bc_ref[...]
        out_ref[...] = out.astype(out_ref.dtype)


# ---------------------------------------------------------------------------
# Wrapper
# ---------------------------------------------------------------------------
def fewshot_forward(x_nchw, wb, bb, wc_t, bc, *, relu=True, tile_b=None,
                    out_dtype=jnp.float32):
    """x_nchw: [B,C,H,W] f32. wb: [K,D], bb: [D], wc_t: [D,NC], bc: [NC].
    Returns logits [B, NC]."""
    B = int(x_nchw.shape[0])
    K = int(x_nchw.shape[1] * x_nchw.shape[2] * x_nchw.shape[3])
    D = int(wb.shape[1])
    NC = int(wc_t.shape[1])

    Dp = _round_up(D, 128)
    NCp = _round_up(NC, 128)

    budget = int(0.75 * _vmem_capacity_bytes())   # headroom for Mosaic scratch

    # K-split when the double-buffered resident backbone weight exceeds ~1/3
    # of the per-generation VMEM budget (realistic CNN K on v7x).
    ksplit = (2 * K * Dp * 2) > budget // 3
    tile_k = 512 if ksplit else K

    # Exact-ish VMEM accounting: double-buffered x/out tiles, double-buffered
    # weights + biases, f32 feat/acc temps, bf16 cast temp.
    bias_bytes = 2 * 8 * (Dp + NCp) * 4
    if ksplit:
        fixed = 2 * (tile_k * Dp * 2 + Dp * NCp * 2) + bias_bytes
        per_row = 2 * tile_k * 4 + 2 * NCp * 4 + 2 * Dp * 4 + tile_k * 2
    else:
        fixed = 2 * (K * Dp * 2 + Dp * NCp * 2) + bias_bytes
        per_row = 2 * K * 4 + 2 * NCp * 4 + 2 * Dp * 4 + K * 2

    if tile_b is None:
        avail = max(budget - fixed, 8 * per_row)
        tile_cap = max(8, min(1024, (avail // per_row) // 8 * 8))
        # >=2 batch steps for mid/large B: both v7x TCs get work and the x-tile
        # DMA pipeline has something to overlap with.
        n_tiles = max(_cdiv(B, tile_cap), 2 if B >= 256 else 1)
        tile_b = min(_round_up(_cdiv(B, n_tiles), 8), tile_cap)
    tile_b = max(8, _round_up(min(int(tile_b), _round_up(B, 8)), 8))

    vmem_limit = int(min(budget,
                         max((fixed + tile_b * per_row) * 1.4, 32 * 1024 * 1024)))

    # --- weight/bias padding (cheap, weights only; x stays unpadded f32) ---
    n_k = _cdiv(K, tile_k)
    Kp = n_k * tile_k if ksplit else K
    wb_p = jnp.zeros((Kp, Dp), jnp.bfloat16).at[:K, :D].set(wb.astype(jnp.bfloat16))
    bb_p = jnp.zeros((1, Dp), jnp.float32).at[0, :D].set(bb.astype(jnp.float32))
    wc_p = jnp.zeros((Dp, NCp), jnp.bfloat16).at[:D, :NC].set(wc_t.astype(jnp.bfloat16))
    bc_p = jnp.zeros((1, NCp), jnp.float32).at[0, :NC].set(bc.astype(jnp.float32))
    x_flat = x_nchw.reshape(B, K).astype(jnp.float32)   # free view, no pad/cast copy

    cost = pl.CostEstimate(
        flops=2 * B * K * Dp + 2 * B * Dp * NCp,
        transcendentals=B,
        bytes_accessed=(B * K * 4 + Kp * Dp * 2 + Dp * NCp * 2
                        + (Dp + NCp) * 4 + B * NCp * 4),
    )

    n_b = _cdiv(B, tile_b)

    if not ksplit:
        kernel = functools.partial(fewshot_kernel, relu=relu)
        grid_spec = pltpu.PrefetchScalarGridSpec(
            num_scalar_prefetch=0,
            grid=(n_b,),
            in_specs=[
                pl.BlockSpec((tile_b, K), lambda i: (i, 0)),   # x tile (streamed)
                pl.BlockSpec((K, Dp), lambda i: (0, 0)),       # backbone W (resident)
                pl.BlockSpec((1, Dp), lambda i: (0, 0)),       # backbone bias
                pl.BlockSpec((Dp, NCp), lambda i: (0, 0)),     # classifier W^T
                pl.BlockSpec((1, NCp), lambda i: (0, 0)),      # classifier bias
            ],
            out_specs=pl.BlockSpec((tile_b, NCp), lambda i: (i, 0)),
        )
        dims = ("parallel",)
    else:
        kernel = functools.partial(fewshot_kernel_ksplit, relu=relu, K=K,
                                   tile_k=tile_k)
        grid_spec = pltpu.PrefetchScalarGridSpec(
            num_scalar_prefetch=0,
            grid=(n_b, n_k),
            in_specs=[
                pl.BlockSpec((tile_b, tile_k), lambda i, k: (i, k)),   # x K-tile
                pl.BlockSpec((tile_k, Dp), lambda i, k: (k, 0)),       # wb K-tile
                pl.BlockSpec((1, Dp), lambda i, k: (0, 0)),
                pl.BlockSpec((Dp, NCp), lambda i, k: (0, 0)),
                pl.BlockSpec((1, NCp), lambda i, k: (0, 0)),
            ],
            out_specs=pl.BlockSpec((tile_b, NCp), lambda i, k: (i, 0)),
            scratch_shapes=[pltpu.VMEM((tile_b, Dp), jnp.float32)],
        )
        dims = ("parallel", "arbitrary")

    out_p = pl.pallas_call(
        kernel,
        out_shape=jax.ShapeDtypeStruct((B, NCp), out_dtype),
        grid_spec=grid_spec,
        compiler_params=pltpu.CompilerParams(
            dimension_semantics=dims,
            vmem_limit_bytes=vmem_limit,
        ),
        cost_estimate=cost,
    )(x_flat, wb_p, bb_p, wc_p, bc_p)

    return out_p[:, :NC]


def build_classifier_from_support(x_sup, y_sup, wb, bb, num_classes, relu=True):
    """Support-based init (get_classifier): per-class mean of (relu'd) backbone
    features, l2-normalized rows; bias zero.  Plain-JAX init-time glue."""
    N = x_sup.shape[0]
    feat = x_sup.reshape(N, -1) @ wb + bb
    if relu:
        feat = jnp.maximum(feat, 0.0)
    onehot = jax.nn.one_hot(y_sup, num_classes, dtype=jnp.float32)        # [N, NC]
    counts = jnp.maximum(onehot.sum(axis=0, keepdims=True).T, 1.0)        # [NC, 1]
    cls_mean = (onehot.T @ feat) / counts                                 # [NC, D]
    norm = jnp.maximum(
        jnp.sqrt(jnp.sum(cls_mean * cls_mean, axis=1, keepdims=True)), 1e-12)
    classifier = cls_mean / norm                                          # [NC, D]
    bias = jnp.zeros((num_classes,), jnp.float32)
    return classifier, bias


if __name__ == "__main__":
    key = jax.random.PRNGKey(0)
    k_x, k_wb, k_bb, k_xs, k_ys = jax.random.split(key, 5)

    # Small shapes consistent with the module's forward.
    B, C, H, W = 8, 4, 16, 16
    K = C * H * W          # 1024 flattened backbone input
    D = 32                 # backbone feature (logit) dim
    NC = 5                 # number of few-shot classes
    RELU = True

    # Deterministic synthetic "pre-trained" backbone parameters.
    wb = jax.random.normal(k_wb, (K, D), jnp.float32) * 0.05
    bb = jax.random.normal(k_bb, (D,), jnp.float32) * 0.01

    # Synthetic support set -> support-based classifier init.
    Ns = 20
    x_sup = jax.random.normal(k_xs, (Ns, C, H, W), jnp.float32)
    y_sup = jax.random.randint(k_ys, (Ns,), 0, NC)
    classifier_w, classifier_b = build_classifier_from_support(
        x_sup, y_sup, wb, bb, NC, relu=RELU)               # [NC, D], [NC]

    # Query inputs.
    x = jax.random.normal(k_x, (B, C, H, W), jnp.float32)

    # Pallas forward (classifier weight passed transposed as [D, NC]).
    out = fewshot_forward(x, wb, bb, classifier_w.T, classifier_b, relu=RELU)
    out = jax.block_until_ready(out)

    # Pure-JAX f32 reference for sanity check (bf16 MXU inputs -> relaxed tol).
    feat_ref = x.reshape(B, K) @ wb + bb
    if RELU:
        feat_ref = jnp.maximum(feat_ref, 0.0)
    nrm = jnp.maximum(jnp.sqrt(jnp.sum(feat_ref * feat_ref, 1, keepdims=True)), 1e-12)
    feat_ref = feat_ref / nrm
    out_ref = feat_ref @ classifier_w.T + classifier_b

    assert out.shape == (B, NC)
    assert jnp.allclose(out, out_ref, atol=3e-2, rtol=1e-2), (
        float(jnp.max(jnp.abs(out - out_ref))))

    print("KERNEL_OK")
</pallas_src>

<mosaic_0001>
module attributes {stable_mosaic.version = 11 : i64} {
  func.func @fewshot_kernel(%arg0: i32, %arg1: memref<8x1024xf32, #tpu.memory_space<vmem>>, %arg2: memref<1024x128xbf16, #tpu.memory_space<vmem>>, %arg3: memref<1x128xf32, #tpu.memory_space<vmem>>, %arg4: memref<128x128xbf16, #tpu.memory_space<vmem>>, %arg5: memref<1x128xf32, #tpu.memory_space<vmem>>, %arg6: memref<8x128xf32, #tpu.memory_space<vmem>>) attributes {dimension_semantics = [#tpu.dimension_semantics<parallel>], iteration_bounds = array<i64: 1>, scalar_prefetch = 0 : i64, scratch_operands = 0 : i64, tpu.core_type = #tpu.core_type<tc>, window_params = [{transform_indices = @transform_0, window_bounds = array<i64: 8, 1024>}, {pipeline_mode = #tpu.pipeline_mode<synchronous>, transform_indices = @transform_1, window_bounds = array<i64: 1024, 128>}, {pipeline_mode = #tpu.pipeline_mode<synchronous>, transform_indices = @transform_2, window_bounds = array<i64: 1, 128>}, {pipeline_mode = #tpu.pipeline_mode<synchronous>, transform_indices = @transform_3, window_bounds = array<i64: 128, 128>}, {pipeline_mode = #tpu.pipeline_mode<synchronous>, transform_indices = @transform_4, window_bounds = array<i64: 1, 128>}, {transform_indices = @transform_5, window_bounds = array<i64: 8, 128>}]} {
    %c0 = arith.constant 0 : index
    %c0_0 = arith.constant 0 : index
    %0 = vector.load %arg1[%c0, %c0_0] : memref<8x1024xf32, #tpu.memory_space<vmem>>, vector<8x1024xf32>
    %1 = arith.truncf %0 : vector<8x1024xf32> to vector<8x1024xbf16>
    %c0_1 = arith.constant 0 : index
    %c0_2 = arith.constant 0 : index
    %2 = vector.load %arg2[%c0_1, %c0_2] : memref<1024x128xbf16, #tpu.memory_space<vmem>>, vector<1024x128xbf16>
    %cst = arith.constant dense<0.000000e+00> : vector<8x128xf32>
    %3 = tpu.matmul %1, %2, %cst {dimension_numbers = #tpu.dot_dimension_numbers<[1], [0], [0], [1], [0, 0, 1, 1], [], []>} : vector<8x1024xbf16>, vector<1024x128xbf16>, vector<8x128xf32> -> vector<8x128xf32>
    %c0_3 = arith.constant 0 : index
    %c0_4 = arith.constant 0 : index
    %4 = vector.load %arg3[%c0_3, %c0_4] : memref<1x128xf32, #tpu.memory_space<vmem>>, vector<1x128xf32>
    %5 = vector.broadcast %4 : vector<1x128xf32> to vector<8x128xf32>
    %6 = arith.addf %3, %5 : vector<8x128xf32>
    %cst_5 = arith.constant 0.000000e+00 : f32
    %7 = vector.broadcast %cst_5 : f32 to vector<8x128xf32>
    %8 = arith.maximumf %6, %7 : vector<8x128xf32>
    %9 = arith.mulf %8, %8 : vector<8x128xf32>
    %cst_6 = arith.constant dense<0.000000e+00> : vector<8xf32>
    %10 = vector.multi_reduction <add>, %9, %cst_6 [1] : vector<8x128xf32> to vector<8xf32>
    %11 = vector.shape_cast %10 : vector<8xf32> to vector<8x1xf32>
    %cst_7 = arith.constant 1.000000e-24 : f32
    %12 = vector.broadcast %cst_7 : f32 to vector<8x1xf32>
    %13 = arith.maximumf %11, %12 : vector<8x1xf32>
    %14 = math.rsqrt %13 : vector<8x1xf32>
    %15 = vector.broadcast %14 : vector<8x1xf32> to vector<8x128xf32>
    %16 = arith.mulf %8, %15 : vector<8x128xf32>
    %17 = arith.truncf %16 : vector<8x128xf32> to vector<8x128xbf16>
    %c0_8 = arith.constant 0 : index
    %c0_9 = arith.constant 0 : index
    %18 = vector.load %arg4[%c0_8, %c0_9] : memref<128x128xbf16, #tpu.memory_space<vmem>>, vector<128x128xbf16>
    %cst_10 = arith.constant dense<0.000000e+00> : vector<8x128xf32>
    %19 = tpu.matmul %17, %18, %cst_10 {dimension_numbers = #tpu.dot_dimension_numbers<[1], [0], [0], [1], [0, 0, 1, 1], [], []>} : vector<8x128xbf16>, vector<128x128xbf16>, vector<8x128xf32> -> vector<8x128xf32>
    %c0_11 = arith.constant 0 : index
    %c0_12 = arith.constant 0 : index
    %20 = vector.load %arg5[%c0_11, %c0_12] : memref<1x128xf32, #tpu.memory_space<vmem>>, vector<1x128xf32>
    %21 = vector.broadcast %20 : vector<1x128xf32> to vector<8x128xf32>
    %22 = arith.addf %19, %21 : vector<8x128xf32>
    %c0_13 = arith.constant 0 : index
    %c0_14 = arith.constant 0 : index
    %23 = vector.load %arg6[%c0_13, %c0_14] : memref<8x128xf32, #tpu.memory_space<vmem>>, vector<8x128xf32>
    tpu.vector_store %arg6[%c0_13, %c0_14], %22 {strides = array<i32>} : memref<8x128xf32, #tpu.memory_space<vmem>>, vector<8x128xf32>,
    return
  }
  func.func @transform_0(%arg0: i32) -> (i32, i32) {
    %c0_i32 = arith.constant 0 : i32
    %c0_i32_0 = arith.constant 0 : i32
    return %arg0, %c0_i32 : i32, i32
  }
  func.func @transform_1(%arg0: i32) -> (i32, i32) {
    %c0_i32 = arith.constant 0 : i32
    %c0_i32_0 = arith.constant 0 : i32
    %c0_i32_1 = arith.constant 0 : i32
    return %c0_i32, %c0_i32_0 : i32, i32
  }
  func.func @transform_2(%arg0: i32) -> (i32, i32) {
    %c0_i32 = arith.constant 0 : i32
    %c0_i32_0 = arith.constant 0 : i32
    %c0_i32_1 = arith.constant 0 : i32
    return %c0_i32, %c0_i32_0 : i32, i32
  }
  func.func @transform_3(%arg0: i32) -> (i32, i32) {
    %c0_i32 = arith.constant 0 : i32
    %c0_i32_0 = arith.constant 0 : i32
    %c0_i32_1 = arith.constant 0 : i32
    return %c0_i32, %c0_i32_0 : i32, i32
  }
  func.func @transform_4(%arg0: i32) -> (i32, i32) {
    %c0_i32 = arith.constant 0 : i32
    %c0_i32_0 = arith.constant 0 : i32
    %c0_i32_1 = arith.constant 0 : i32
    return %c0_i32, %c0_i32_0 : i32, i32
  }
  func.func @transform_5(%arg0: i32) -> (i32, i32) {
    %c0_i32 = arith.constant 0 : i32
    %c0_i32_0 = arith.constant 0 : i32
    return %arg0, %c0_i32 : i32, i32
  }
}

</mosaic_0001>

<llo_original>
// kernel: tpu_custom_call.1
$region0: #{tpu_custom_call.1}
  #allocation0 [shape = 'u32[]', space=smem, size = 0x4, offset = 0x4, fixed_abs, tag = 'smem constant byte address 0x4 - core index']
  #allocation1 [shape = 'u32[144,128]{1,0:T(1,128)}', space=vmem, size = 0x12000, scoped, tag = 'internal scratch']
  %s0 = inlined_call_operand.hbm [shape: f32[8,1024], index: 0, kind: input, shape index: {}]
  %s1 = inlined_call_operand.hbm [shape: bf16[1024,128], index: 1, kind: input, shape index: {}]
  %s2 = inlined_call_operand.vmem [shape: f32[1,128], index: 2, kind: input, shape index: {}]
  %s3 = inlined_call_operand.hbm [shape: bf16[128,128], index: 3, kind: input, shape index: {}]
  %s4 = inlined_call_operand.vmem [shape: f32[1,128], index: 4, kind: input, shape index: {}]
  %s5 = inlined_call_operand.hbm [shape: f32[8,128], index: 5, kind: output, shape index: {}]
  %s6 = sld [smem:[#allocation0]]
  $region42: #{tpu_custom_call.1} parent=0
    _
  %s8 = ssub.s32 1, %s6
  %s9 = scalar_select 0, %s8, %s6
  $region1: #{tpu_custom_call.1} parent=0
    #allocation2 [shape = 'u8[32768]{0}', space=vmem, size = 0x8000, scoped, tag = 'input window, operand 0, single buffered']
    #allocation3 [shape = 's32[1]{0}', space=sflag, size = 0x4, scoped, tag = 'scoped memory for tpu_custom_call.1']
    #allocation4 [shape = 's32[1]{0}', space=sflag, size = 0x4, scoped, tag = 'scoped memory for tpu_custom_call.1']
    #allocation5 [shape = 'u8[262144]{0}', space=vmem, size = 0x40000, scoped, tag = 'input window, operand 1, single buffered']
    #allocation6 [shape = 's32[1]{0}', space=sflag, size = 0x4, scoped, tag = 'scoped memory for tpu_custom_call.1']
    #allocation7 [shape = 'u8[32768]{0}', space=vmem, size = 0x8000, scoped, tag = 'input window, operand 3, single buffered']
    #allocation8 [shape = 'u8[4096]{0}', space=vmem, size = 0x1000, scoped, tag = 'output window, operand 0, single buffered']
    %10 = vsyncpa [#allocation3], 0
    %11 = vsyncpa [#allocation6], 0
    %12 = vsyncpa [#allocation4], 0
    // Predicated region
    $region2: #{tpu_custom_call.1} parent=1 // pred_check
      _
    $region3: #{tpu_custom_call.1} parent=1 // pred_check_branch
      %14 = sbr.rel (0) target = $region5
    $region4: #{tpu_custom_call.1} parent=1 // pred_region
      %s16 = ssub.s32 1024, 1024
      %17 = vsyncadd [#allocation3], %s16
      %s19 = sshll.u32 [#allocation2], 4
      %s20 = int_to_ptr.vmem [resolvable:$true] %s19
      %22 = dma.hbm_to_vmem [thread:$0]  %s0, 1024, %s20, [#allocation3]
    $region5: #{tpu_custom_call.1} parent=1 // pred_fallthru
      _
    // Predicated region
    $region6: #{tpu_custom_call.1} parent=1 // pred_check
      _
    $region7: #{tpu_custom_call.1} parent=1 // pred_check_branch
      %24 = sbr.rel (0) target = $region9
    $region8: #{tpu_custom_call.1} parent=1 // pred_region
      %s26 = ssub.s32 8192, 8192
      %27 = vsyncadd [#allocation6], %s26
      %s28 = sshll.u32 [#allocation5], 4
      %s29 = int_to_ptr.vmem [resolvable:$true] %s28
      %34 = dma.hbm_to_vmem [thread:$0]  %s1, 8192, %s29, [#allocation6], 64, 64, 4
    $region9: #{tpu_custom_call.1} parent=1 // pred_fallthru
      _
    // Predicated region
    $region10: #{tpu_custom_call.1} parent=1 // pred_check
      _
    $region11: #{tpu_custom_call.1} parent=1 // pred_check_branch
      %36 = sbr.rel (0) target = $region13
    $region12: #{tpu_custom_call.1} parent=1 // pred_region
      _
    $region13: #{tpu_custom_call.1} parent=1 // pred_fallthru
      _
    // Predicated region
    $region14: #{tpu_custom_call.1} parent=1 // pred_check
      _
    $region15: #{tpu_custom_call.1} parent=1 // pred_check_branch
      %38 = sbr.rel (0) target = $region17
    $region16: #{tpu_custom_call.1} parent=1 // pred_region
      %s40 = ssub.s32 1024, 1024
      %41 = vsyncadd [#allocation6], %s40
      %s42 = sshll.u32 [#allocation7], 4
      %s43 = int_to_ptr.vmem [resolvable:$true] %s42
      %48 = dma.hbm_to_vmem [thread:$0]  %s3, 1024, %s43, [#allocation6], 64, 64, 4
    $region17: #{tpu_custom_call.1} parent=1 // pred_fallthru
      _
    // Predicated region
    $region18: #{tpu_custom_call.1} parent=1 // pred_check
      _
    $region19: #{tpu_custom_call.1} parent=1 // pred_check_branch
      %50 = sbr.rel (0) target = $region21
    $region20: #{tpu_custom_call.1} parent=1 // pred_region
      _
    $region21: #{tpu_custom_call.1} parent=1 // pred_fallthru
      _
    // Predicated region
    $region22: #{tpu_custom_call.1} parent=1 // pred_check
      _
    $region23: #{tpu_custom_call.1} parent=1 // pred_check_branch
      %52 = sbr.rel (0) target = $region25
    $region24: #{tpu_custom_call.1} parent=1 // pred_region
      %53 = dma.done [#allocation3], 1024
    $region25: #{tpu_custom_call.1} parent=1 // pred_fallthru
      _
    // Predicated region
    $region26: #{tpu_custom_call.1} parent=1 // pred_check
      _
    $region27: #{tpu_custom_call.1} parent=1 // pred_check_branch
      %55 = sbr.rel (0) target = $region29
    $region28: #{tpu_custom_call.1} parent=1 // pred_region
      %56 = dma.done [#allocation6], 8192
    $region29: #{tpu_custom_call.1} parent=1 // pred_fallthru
      _
    // Predicated region
    $region30: #{tpu_custom_call.1} parent=1 // pred_check
      _
    $region31: #{tpu_custom_call.1} parent=1 // pred_check_branch
      %58 = sbr.rel (0) target = $region33
    $region32: #{tpu_custom_call.1} parent=1 // pred_region
      %59 = dma.done [#allocation6], 1024
    $region33: #{tpu_custom_call.1} parent=1 // pred_fallthru
      _
    %v61 = vld [vmem:[#allocation2] sm:$0xff]
    %v62 = vld [vmem:[#allocation2 + $0x8] sm:$0xff]
    %v63 = vld [vmem:[#allocation2 + $0x10] sm:$0xff]
    %v64 = vld [vmem:[#allocation2 + $0x18] sm:$0xff]
    %v65 = vld [vmem:[#allocation2 + $0x20] sm:$0xff]
    %v66 = vld [vmem:[#allocation2 + $0x28] sm:$0xff]
    %v67 = vld [vmem:[#allocation2 + $0x30] sm:$0xff]
    %v68 = vld [vmem:[#allocation2 + $0x38] sm:$0xff]
    %v69 = vpack.c.bf16 %v61, %v61
    %v70 = vpack.c.bf16 %v62, %v62
    %v71 = vpack.c.bf16 %v63, %v63
    %v72 = vpack.c.bf16 %v64, %v64
    %v73 = vpack.c.bf16 %v65, %v65
    %v74 = vpack.c.bf16 %v66, %v66
    %v75 = vpack.c.bf16 %v67, %v67
    %v76 = vpack.c.bf16 %v68, %v68
    %v77 = vld [vmem:[#allocation5] sm:$0xf]
    %v78 = vld [vmem:[#allocation5 + $0x4] sm:$0xf]
    %v79 = vld [vmem:[#allocation5 + $0x8] sm:$0xf]
    %v80 = vld [vmem:[#allocation5 + $0xc] sm:$0xf]
    %v81 = vld [vmem:[#allocation5 + $0x10] sm:$0xf]
    %v82 = vld [vmem:[#allocation5 + $0x14] sm:$0xf]
    %v83 = vld [vmem:[#allocation5 + $0x18] sm:$0xf]
    %v84 = vld [vmem:[#allocation5 + $0x1c] sm:$0xf]
    %v85 = vld [vmem:[#allocation5 + $0x20] sm:$0xf]
    %v86 = vld [vmem:[#allocation5 + $0x24] sm:$0xf]
    %v87 = vld [vmem:[#allocation5 + $0x28] sm:$0xf]
    %v88 = vld [vmem:[#allocation5 + $0x2c] sm:$0xf]
    %v89 = vld [vmem:[#allocation5 + $0x30] sm:$0xf]
    %v90 = vld [vmem:[#allocation5 + $0x34] sm:$0xf]
    %v91 = vld [vmem:[#allocation5 + $0x38] sm:$0xf]
    %v92 = vld [vmem:[#allocation5 + $0x3c] sm:$0xf]
    %v93 = vld [vmem:[#allocation5 + $0x40] sm:$0xf]
    %v94 = vld [vmem:[#allocation5 + $0x44] sm:$0xf]
    %v95 = vld [vmem:[#allocation5 + $0x48] sm:$0xf]
    %v96 = vld [vmem:[#allocation5 + $0x4c] sm:$0xf]
    %v97 = vld [vmem:[#allocation5 + $0x50] sm:$0xf]
    %v98 = vld [vmem:[#allocation5 + $0x54] sm:$0xf]
    %v99 = vld [vmem:[#allocation5 + $0x58] sm:$0xf]
    %v100 = vld [vmem:[#allocation5 + $0x5c] sm:$0xf]
    %v101 = vld [vmem:[#allocation5 + $0x60] sm:$0xf]
    %v102 = vld [vmem:[#allocation5 + $0x64] sm:$0xf]
    %v103 = vld [vmem:[#allocation5 + $0x68] sm:$0xf]
    %v104 = vld [vmem:[#allocation5 + $0x6c] sm:$0xf]
    %v105 = vld [vmem:[#allocation5 + $0x70] sm:$0xf]
    %v106 = vld [vmem:[#allocation5 + $0x74] sm:$0xf]
    %v107 = vld [vmem:[#allocation5 + $0x78] sm:$0xf]
    %v108 = vld [vmem:[#allocation5 + $0x7c] sm:$0xf]
    %v109 = vld [vmem:[#allocation5 + $0x80] sm:$0xf]
    %v110 = vld [vmem:[#allocation5 + $0x84] sm:$0xf]
    %v111 = vld [vmem:[#allocation5 + $0x88] sm:$0xf]
    %v112 = vld [vmem:[#allocation5 + $0x8c] sm:$0xf]
    %v113 = vld [vmem:[#allocation5 + $0x90] sm:$0xf]
    %v114 = vld [vmem:[#allocation5 + $0x94] sm:$0xf]
    %v115 = vld [vmem:[#allocation5 + $0x98] sm:$0xf]
    %v116 = vld [vmem:[#allocation5 + $0x9c] sm:$0xf]
    %v117 = vld [vmem:[#allocation5 + $0xa0] sm:$0xf]
    %v118 = vld [vmem:[#allocation5 + $0xa4] sm:$0xf]
    %v119 = vld [vmem:[#allocation5 + $0xa8] sm:$0xf]
    %v120 = vld [vmem:[#allocation5 + $0xac] sm:$0xf]
    %v121 = vld [vmem:[#allocation5 + $0xb0] sm:$0xf]
    %v122 = vld [vmem:[#allocation5 + $0xb4] sm:$0xf]
    %v123 = vld [vmem:[#allocation5 + $0xb8] sm:$0xf]
    %v124 = vld [vmem:[#allocation5 + $0xbc] sm:$0xf]
    %v125 = vld [vmem:[#allocation5 + $0xc0] sm:$0xf]
    %v126 = vld [vmem:[#allocation5 + $0xc4] sm:$0xf]
    %v127 = vld [vmem:[#allocation5 + $0xc8] sm:$0xf]
    %v128 = vld [vmem:[#allocation5 + $0xcc] sm:$0xf]
    %v129 = vld [vmem:[#allocation5 + $0xd0] sm:$0xf]
    %v130 = vld [vmem:[#allocation5 + $0xd4] sm:$0xf]
    %v131 = vld [vmem:[#allocation5 + $0xd8] sm:$0xf]
    %v132 = vld [vmem:[#allocation5 + $0xdc] sm:$0xf]
    %v133 = vld [vmem:[#allocation5 + $0xe0] sm:$0xf]
    %v134 = vld [vmem:[#allocation5 + $0xe4] sm:$0xf]
    %v135 = vld [vmem:[#allocation5 + $0xe8] sm:$0xf]
    %v136 = vld [vmem:[#allocation5 + $0xec] sm:$0xf]
    %v137 = vld [vmem:[#allocation5 + $0xf0] sm:$0xf]
    %v138 = vld [vmem:[#allocation5 + $0xf4] sm:$0xf]
    %v139 = vld [vmem:[#allocation5 + $0xf8] sm:$0xf]
    %v140 = vld [vmem:[#allocation5 + $0xfc] sm:$0xf]
    %v141 = vld [vmem:[#allocation5 + $0x100] sm:$0xf]
    %v142 = vld [vmem:[#allocation5 + $0x104] sm:$0xf]
    %v143 = vld [vmem:[#allocation5 + $0x108] sm:$0xf]
    %v144 = vld [vmem:[#allocation5 + $0x10c] sm:$0xf]
    %v145 = vld [vmem:[#allocation5 + $0x110] sm:$0xf]
    %v146 = vld [vmem:[#allocation5 + $0x114] sm:$0xf]
    %v147 = vld [vmem:[#allocation5 + $0x118] sm:$0xf]
    %v148 = vld [vmem:[#allocation5 + $0x11c] sm:$0xf]
    %v149 = vld [vmem:[#allocation5 + $0x120] sm:$0xf]
    %v150 = vld [vmem:[#allocation5 + $0x124] sm:$0xf]
    %v151 = vld [vmem:[#allocation5 + $0x128] sm:$0xf]
    %v152 = vld [vmem:[#allocation5 + $0x12c] sm:$0xf]
    %v153 = vld [vmem:[#allocation5 + $0x130] sm:$0xf]
    %v154 = vld [vmem:[#allocation5 + $0x134] sm:$0xf]
    %v155 = vld [vmem:[#allocation5 + $0x138] sm:$0xf]
    %v156 = vld [vmem:[#allocation5 + $0x13c] sm:$0xf]
    %v157 = vld [vmem:[#allocation5 + $0x140] sm:$0xf]
    %v158 = vld [vmem:[#allocation5 + $0x144] sm:$0xf]
    %v159 = vld [vmem:[#allocation5 + $0x148] sm:$0xf]
    %v160 = vld [vmem:[#allocation5 + $0x14c] sm:$0xf]
    %v161 = vld [vmem:[#allocation5 + $0x150] sm:$0xf]
    %v162 = vld [vmem:[#allocation5 + $0x154] sm:$0xf]
    %v163 = vld [vmem:[#allocation5 + $0x158] sm:$0xf]
    %v164 = vld [vmem:[#allocation5 + $0x15c] sm:$0xf]
    %v165 = vld [vmem:[#allocation5 + $0x160] sm:$0xf]
    %v166 = vld [vmem:[#allocation5 + $0x164] sm:$0xf]
    %v167 = vld [vmem:[#allocation5 + $0x168] sm:$0xf]
    %v168 = vld [vmem:[#allocation5 + $0x16c] sm:$0xf]
    %v169 = vld [vmem:[#allocation5 + $0x170] sm:$0xf]
    %v170 = vld [vmem:[#allocation5 + $0x174] sm:$0xf]
    %v171 = vld [vmem:[#allocation5 + $0x178] sm:$0xf]
    %v172 = vld [vmem:[#allocation5 + $0x17c] sm:$0xf]
    %v173 = vld [vmem:[#allocation5 + $0x180] sm:$0xf]
    %v174 = vld [vmem:[#allocation5 + $0x184] sm:$0xf]
    %v175 = vld [vmem:[#allocation5 + $0x188] sm:$0xf]
    %v176 = vld [vmem:[#allocation5 + $0x18c] sm:$0xf]
    %v177 = vld [vmem:[#allocation5 + $0x190] sm:$0xf]
    %v178 = vld [vmem:[#allocation5 + $0x194] sm:$0xf]
    %v179 = vld [vmem:[#allocation5 + $0x198] sm:$0xf]
    %v180 = vld [vmem:[#allocation5 + $0x19c] sm:$0xf]
    %v181 = vld [vmem:[#allocation5 + $0x1a0] sm:$0xf]
    %v182 = vld [vmem:[#allocation5 + $0x1a4] sm:$0xf]
    %v183 = vld [vmem:[#allocation5 + $0x1a8] sm:$0xf]
    %v184 = vld [vmem:[#allocation5 + $0x1ac] sm:$0xf]
    %v185 = vld [vmem:[#allocation5 + $0x1b0] sm:$0xf]
    %v186 = vld [vmem:[#allocation5 + $0x1b4] sm:$0xf]
    %v187 = vld [vmem:[#allocation5 + $0x1b8] sm:$0xf]
    %v188 = vld [vmem:[#allocation5 + $0x1bc] sm:$0xf]
    %v189 = vld [vmem:[#allocation5 + $0x1c0] sm:$0xf]
    %v190 = vld [vmem:[#allocation5 + $0x1c4] sm:$0xf]
    %v191 = vld [vmem:[#allocation5 + $0x1c8] sm:$0xf]
    %v192 = vld [vmem:[#allocation5 + $0x1cc] sm:$0xf]
    %v193 = vld [vmem:[#allocation5 + $0x1d0] sm:$0xf]
    %v194 = vld [vmem:[#allocation5 + $0x1d4] sm:$0xf]
    %v195 = vld [vmem:[#allocation5 + $0x1d8] sm:$0xf]
    %v196 = vld [vmem:[#allocation5 + $0x1dc] sm:$0xf]
    %v197 = vld [vmem:[#allocation5 + $0x1e0] sm:$0xf]
    %v198 = vld [vmem:[#allocation5 + $0x1e4] sm:$0xf]
    %v199 = vld [vmem:[#allocation5 + $0x1e8] sm:$0xf]
    %v200 = vld [vmem:[#allocation5 + $0x1ec] sm:$0xf]
    %v201 = vld [vmem:[#allocation5 + $0x1f0] sm:$0xf]
    %v202 = vld [vmem:[#allocation5 + $0x1f4] sm:$0xf]
    %v203 = vld [vmem:[#allocation5 + $0x1f8] sm:$0xf]
    %v204 = vld [vmem:[#allocation5 + $0x1fc] sm:$0xf]
    %v205 = vld [vmem:[%s2] sm:$0x1]
    %v207 = vlaneseq
    %v208 = vshrl.u32 %v207, 7
    %v209 = vsub.s32 0, %v208
    %v210 = vrot.slane %v205, %v209
    %v340 = vunpack.c.l.b16 %v77
    %v341 = vunpack.c.l.b16 %v78
    %v342 = vunpack.c.l.b16 %v79
    %v343 = vunpack.c.l.b16 %v80
    %v344 = vunpack.c.l.b16 %v81
    %v345 = vunpack.c.l.b16 %v82
    %v346 = vunpack.c.l.b16 %v83
    %v347 = vunpack.c.l.b16 %v84
    %v348 = vunpack.c.l.b16 %v85
    %v349 = vunpack.c.l.b16 %v86
    %v350 = vunpack.c.l.b16 %v87
    %v351 = vunpack.c.l.b16 %v88
    %v352 = vunpack.c.l.b16 %v89
    %v353 = vunpack.c.l.b16 %v90
    %v354 = vunpack.c.l.b16 %v91
    %v355 = vunpack.c.l.b16 %v92
    %v356 = vunpack.c.l.b16 %v93
    %v357 = vunpack.c.l.b16 %v94
    %v358 = vunpack.c.l.b16 %v95
    %v359 = vunpack.c.l.b16 %v96
    %v360 = vunpack.c.l.b16 %v97
    %v361 = vunpack.c.l.b16 %v98
    %v362 = vunpack.c.l.b16 %v99
    %v363 = vunpack.c.l.b16 %v100
    %v364 = vunpack.c.l.b16 %v101
    %v365 = vunpack.c.l.b16 %v102
    %v366 = vunpack.c.l.b16 %v103
    %v367 = vunpack.c.l.b16 %v104
    %v368 = vunpack.c.l.b16 %v105
    %v369 = vunpack.c.l.b16 %v106
    %v370 = vunpack.c.l.b16 %v107
    %v371 = vunpack.c.l.b16 %v108
    %v372 = vunpack.c.l.b16 %v109
    %v373 = vunpack.c.l.b16 %v110
    %v374 = vunpack.c.l.b16 %v111
    %v375 = vunpack.c.l.b16 %v112
    %v376 = vunpack.c.l.b16 %v113
    %v377 = vunpack.c.l.b16 %v114
    %v378 = vunpack.c.l.b16 %v115
    %v379 = vunpack.c.l.b16 %v116
    %v380 = vunpack.c.l.b16 %v117
    %v381 = vunpack.c.l.b16 %v118
    %v382 = vunpack.c.l.b16 %v119
    %v383 = vunpack.c.l.b16 %v120
    %v384 = vunpack.c.l.b16 %v121
    %v385 = vunpack.c.l.b16 %v122
    %v386 = vunpack.c.l.b16 %v123
    %v387 = vunpack.c.l.b16 %v124
    %v388 = vunpack.c.l.b16 %v125
    %v389 = vunpack.c.l.b16 %v126
    %v390 = vunpack.c.l.b16 %v127
    %v391 = vunpack.c.l.b16 %v128
    %v392 = vunpack.c.l.b16 %v129
    %v393 = vunpack.c.l.b16 %v130
    %v394 = vunpack.c.l.b16 %v131
    %v395 = vunpack.c.l.b16 %v132
    %v396 = vunpack.c.l.b16 %v133
    %v397 = vunpack.c.l.b16 %v134
    %v398 = vunpack.c.l.b16 %v135
    %v399 = vunpack.c.l.b16 %v136
    %v400 = vunpack.c.l.b16 %v137
    %v401 = vunpack.c.l.b16 %v138
    %v402 = vunpack.c.l.b16 %v139
    %v403 = vunpack.c.l.b16 %v140
    %v404 = vunpack.c.l.b16 %v141
    %v405 = vunpack.c.l.b16 %v142
    %v406 = vunpack.c.l.b16 %v143
    %v407 = vunpack.c.l.b16 %v144
    %v408 = vunpack.c.l.b16 %v145
    %v409 = vunpack.c.l.b16 %v146
    %v410 = vunpack.c.l.b16 %v147
    %v411 = vunpack.c.l.b16 %v148
    %v412 = vunpack.c.l.b16 %v149
    %v413 = vunpack.c.l.b16 %v150
    %v414 = vunpack.c.l.b16 %v151
    %v415 = vunpack.c.l.b16 %v152
    %v416 = vunpack.c.l.b16 %v153
    %v417 = vunpack.c.l.b16 %v154
    %v418 = vunpack.c.l.b16 %v155
    %v419 = vunpack.c.l.b16 %v156
    %v420 = vunpack.c.l.b16 %v157
    %v421 = vunpack.c.l.b16 %v158
    %v422 = vunpack.c.l.b16 %v159
    %v423 = vunpack.c.l.b16 %v160
    %v424 = vunpack.c.l.b16 %v161
    %v425 = vunpack.c.l.b16 %v162
    %v426 = vunpack.c.l.b16 %v163
    %v427 = vunpack.c.l.b16 %v164
    %v428 = vunpack.c.l.b16 %v165
    %v429 = vunpack.c.l.b16 %v166
    %v430 = vunpack.c.l.b16 %v167
    %v431 = vunpack.c.l.b16 %v168
    %v432 = vunpack.c.l.b16 %v169
    %v433 = vunpack.c.l.b16 %v170
    %v434 = vunpack.c.l.b16 %v171
    %v435 = vunpack.c.l.b16 %v172
    %v436 = vunpack.c.l.b16 %v173
    %v437 = vunpack.c.l.b16 %v174
    %v438 = vunpack.c.l.b16 %v175
    %v439 = vunpack.c.l.b16 %v176
    %v440 = vunpack.c.l.b16 %v177
    %v441 = vunpack.c.l.b16 %v178
    %v442 = vunpack.c.l.b16 %v179
    %v443 = vunpack.c.l.b16 %v180
    %v444 = vunpack.c.l.b16 %v181
    %v445 = vunpack.c.l.b16 %v182
    %v446 = vunpack.c.l.b16 %v183
    %v447 = vunpack.c.l.b16 %v184
    %v448 = vunpack.c.l.b16 %v185
    %v449 = vunpack.c.l.b16 %v186
    %v450 = vunpack.c.l.b16 %v187
    %v451 = vunpack.c.l.b16 %v188
    %v452 = vunpack.c.l.b16 %v189
    %v453 = vunpack.c.l.b16 %v190
    %v454 = vunpack.c.l.b16 %v191
    %v455 = vunpack.c.l.b16 %v192
    %v456 = vunpack.c.l.b16 %v193
    %v457 = vunpack.c.l.b16 %v194
    %v458 = vunpack.c.l.b16 %v195
    %v459 = vunpack.c.l.b16 %v196
    %v460 = vunpack.c.l.b16 %v197
    %v461 = vunpack.c.l.b16 %v198
    %v462 = vunpack.c.l.b16 %v199
    %v463 = vunpack.c.l.b16 %v200
    %v464 = vunpack.c.l.b16 %v201
    %v465 = vunpack.c.l.b16 %v202
    %v466 = vunpack.c.l.b16 %v203
    %v467 = vunpack.c.l.b16 %v204
    %v468 = vpack.c.b16 %v341, %v340
    %v469 = vpack.c.b16 %v343, %v342
    %v470 = vpack.c.b16 %v345, %v344
    %v471 = vpack.c.b16 %v347, %v346
    %v472 = vpack.c.b16 %v349, %v348
    %v473 = vpack.c.b16 %v351, %v350
    %v474 = vpack.c.b16 %v353, %v352
    %v475 = vpack.c.b16 %v355, %v354
    %v476 = vpack.c.b16 %v357, %v356
    %v477 = vpack.c.b16 %v359, %v358
    %v478 = vpack.c.b16 %v361, %v360
    %v479 = vpack.c.b16 %v363, %v362
    %v480 = vpack.c.b16 %v365, %v364
    %v481 = vpack.c.b16 %v367, %v366
    %v482 = vpack.c.b16 %v369, %v368
    %v483 = vpack.c.b16 %v371, %v370
    %v484 = vpack.c.b16 %v373, %v372
    %v485 = vpack.c.b16 %v375, %v374
    %v486 = vpack.c.b16 %v377, %v376
    %v487 = vpack.c.b16 %v379, %v378
    %v488 = vpack.c.b16 %v381, %v380
    %v489 = vpack.c.b16 %v383, %v382
    %v490 = vpack.c.b16 %v385, %v384
    %v491 = vpack.c.b16 %v387, %v386
    %v492 = vpack.c.b16 %v389, %v388
    %v493 = vpack.c.b16 %v391, %v390
    %v494 = vpack.c.b16 %v393, %v392
    %v495 = vpack.c.b16 %v395, %v394
    %v496 = vpack.c.b16 %v397, %v396
    %v497 = vpack.c.b16 %v399, %v398
    %v498 = vpack.c.b16 %v401, %v400
    %v499 = vpack.c.b16 %v403, %v402
    %v500 = vpack.c.b16 %v405, %v404
    %v501 = vpack.c.b16 %v407, %v406
    %v502 = vpack.c.b16 %v409, %v408
    %v503 = vpack.c.b16 %v411, %v410
    %v504 = vpack.c.b16 %v413, %v412
    %v505 = vpack.c.b16 %v415, %v414
    %v506 = vpack.c.b16 %v417, %v416
    %v507 = vpack.c.b16 %v419, %v418
    %v508 = vpack.c.b16 %v421, %v420
    %v509 = vpack.c.b16 %v423, %v422
    %v510 = vpack.c.b16 %v425, %v424
    %v511 = vpack.c.b16 %v427, %v426
    %v512 = vpack.c.b16 %v429, %v428
    %v513 = vpack.c.b16 %v431, %v430
    %v514 = vpack.c.b16 %v433, %v432
    %v515 = vpack.c.b16 %v435, %v434
    %v516 = vpack.c.b16 %v437, %v436
    %v517 = vpack.c.b16 %v439, %v438
    %v518 = vpack.c.b16 %v441, %v440
    %v519 = vpack.c.b16 %v443, %v442
    %v520 = vpack.c.b16 %v445, %v444
    %v521 = vpack.c.b16 %v447, %v446
    %v522 = vpack.c.b16 %v449, %v448
    %v523 = vpack.c.b16 %v451, %v450
    %v524 = vpack.c.b16 %v453, %v452
    %v525 = vpack.c.b16 %v455, %v454
    %v526 = vpack.c.b16 %v457, %v456
    %v527 = vpack.c.b16 %v459, %v458
    %v528 = vpack.c.b16 %v461, %v460
    %v529 = vpack.c.b16 %v463, %v462
    %v530 = vpack.c.b16 %v465, %v464
    %v531 = vpack.c.b16 %v467, %v466
    %596 = vmatprep.subr.bf16.mxu0 0
    %597 = vmatpush1.bf16.msra.mxu0 %v468
    %598 = vmatprep.subr.bf16.mxu0 0
    %599 = vmatpush1.bf16.msra.mxu0 %v469
    %600 = vmatprep.subr.bf16.mxu0 0
    %601 = vmatpush1.bf16.msra.mxu0 %v470
    %602 = vmatprep.subr.bf16.mxu0 0
    %603 = vmatpush1.bf16.msra.mxu0 %v471
    %604 = vmatprep.subr.bf16.mxu0 0
    %605 = vmatpush1.bf16.msra.mxu0 %v472
    %606 = vmatprep.subr.bf16.mxu0 0
    %607 = vmatpush1.bf16.msra.mxu0 %v473
    %608 = vmatprep.subr.bf16.mxu0 0
    %609 = vmatpush1.bf16.msra.mxu0 %v474
    %610 = vmatprep.subr.bf16.mxu0 0
    %611 = vmatpush1.bf16.msra.mxu0 %v475
    %612 = vmatprep.subr.bf16.mxu0 0
    %613 = vmatpush1.bf16.msra.mxu0 %v476
    %614 = vmatprep.subr.bf16.mxu0 0
    %615 = vmatpush1.bf16.msra.mxu0 %v477
    %616 = vmatprep.subr.bf16.mxu0 0
    %617 = vmatpush1.bf16.msra.mxu0 %v478
    %618 = vmatprep.subr.bf16.mxu0 0
    %619 = vmatpush1.bf16.msra.mxu0 %v479
    %620 = vmatprep.subr.bf16.mxu0 0
    %621 = vmatpush1.bf16.msra.mxu0 %v480
    %622 = vmatprep.subr.bf16.mxu0 0
    %623 = vmatpush1.bf16.msra.mxu0 %v481
    %624 = vmatprep.subr.bf16.mxu0 0
    %625 = vmatpush1.bf16.msra.mxu0 %v482
    %626 = vmatprep.subr.bf16.mxu0 0
    %627 = vmatpush1.bf16.msra.mxu0 %v483
    %628 = vmatprep.mubr.bf16.mxu0 %v70
    %629 = vmatmul.mubr.bf16.gmra.mrb[0].mxu0 %v69
    %v630 = vpop.f32.mrb[0].mxu0
    %v631 = vadd.f32 %v210, %v630
    %v632 = vpop.f32.mrb[0].mxu0
    %v633 = vpop.f32.mrb[0].mxu0
    %v634 = vpop.f32.mrb[0].mxu0
    %635 = vdwg.mxu0
    %636 = vmatprep.subr.bf16.mxu0 0
    %637 = vmatpush1.bf16.msra.mxu0 %v484
    %638 = vmatprep.subr.bf16.mxu0 0
    %639 = vmatpush1.bf16.msra.mxu0 %v485
    %640 = vmatprep.subr.bf16.mxu0 0
    %641 = vmatpush1.bf16.msra.mxu0 %v486
    %642 = vmatprep.subr.bf16.mxu0 0
    %643 = vmatpush1.bf16.msra.mxu0 %v487
    %644 = vmatprep.subr.bf16.mxu0 0
    %645 = vmatpush1.bf16.msra.mxu0 %v488
    %646 = vmatprep.subr.bf16.mxu0 0
    %647 = vmatpush1.bf16.msra.mxu0 %v489
    %648 = vmatprep.subr.bf16.mxu0 0
    %649 = vmatpush1.bf16.msra.mxu0 %v490
    %650 = vmatprep.subr.bf16.mxu0 0
    %651 = vmatpush1.bf16.msra.mxu0 %v491
    %652 = vmatprep.subr.bf16.mxu0 0
    %653 = vmatpush1.bf16.msra.mxu0 %v492
    %654 = vmatprep.subr.bf16.mxu0 0
    %655 = vmatpush1.bf16.msra.mxu0 %v493
    %656 = vmatprep.subr.bf16.mxu0 0
    %657 = vmatpush1.bf16.msra.mxu0 %v494
    %658 = vmatprep.subr.bf16.mxu0 0
    %659 = vmatpush1.bf16.msra.mxu0 %v495
    %660 = vmatprep.subr.bf16.mxu0 0
    %661 = vmatpush1.bf16.msra.mxu0 %v496
    %662 = vmatprep.subr.bf16.mxu0 0
    %663 = vmatpush1.bf16.msra.mxu0 %v497
    %664 = vmatprep.subr.bf16.mxu0 0
    %665 = vmatpush1.bf16.msra.mxu0 %v498
    %666 = vmatprep.subr.bf16.mxu0 0
    %667 = vmatpush1.bf16.msra.mxu0 %v499
    %668 = vmatprep.mubr.bf16.mxu0 %v72
    %669 = vmatmul.mubr.bf16.gmra.mrb[0].mxu0 %v71
    %v670 = vpop.f32.mrb[0].mxu0
    %v671 = vadd.f32 %v631, %v670
    %v672 = vpop.f32.mrb[0].mxu0
    %v673 = vpop.f32.mrb[0].mxu0
    %v674 = vpop.f32.mrb[0].mxu0
    %675 = vdwg.mxu0
    %676 = vmatprep.subr.bf16.mxu0 0
    %677 = vmatpush1.bf16.msra.mxu0 %v500
    %678 = vmatprep.subr.bf16.mxu0 0
    %679 = vmatpush1.bf16.msra.mxu0 %v501
    %680 = vmatprep.subr.bf16.mxu0 0
    %681 = vmatpush1.bf16.msra.mxu0 %v502
    %682 = vmatprep.subr.bf16.mxu0 0
    %683 = vmatpush1.bf16.msra.mxu0 %v503
    %684 = vmatprep.subr.bf16.mxu0 0
    %685 = vmatpush1.bf16.msra.mxu0 %v504
    %686 = vmatprep.subr.bf16.mxu0 0
    %687 = vmatpush1.bf16.msra.mxu0 %v505
    %688 = vmatprep.subr.bf16.mxu0 0
    %689 = vmatpush1.bf16.msra.mxu0 %v506
    %690 = vmatprep.subr.bf16.mxu0 0
    %691 = vmatpush1.bf16.msra.mxu0 %v507
    %692 = vmatprep.subr.bf16.mxu0 0
    %693 = vmatpush1.bf16.msra.mxu0 %v508
    %694 = vmatprep.subr.bf16.mxu0 0
    %695 = vmatpush1.bf16.msra.mxu0 %v509
    %696 = vmatprep.subr.bf16.mxu0 0
    %697 = vmatpush1.bf16.msra.mxu0 %v510
    %698 = vmatprep.subr.bf16.mxu0 0
    %699 = vmatpush1.bf16.msra.mxu0 %v511
    %700 = vmatprep.subr.bf16.mxu0 0
    %701 = vmatpush1.bf16.msra.mxu0 %v512
    %702 = vmatprep.subr.bf16.mxu0 0
    %703 = vmatpush1.bf16.msra.mxu0 %v513
    %704 = vmatprep.subr.bf16.mxu0 0
    %705 = vmatpush1.bf16.msra.mxu0 %v514
    %706 = vmatprep.subr.bf16.mxu0 0
    %707 = vmatpush1.bf16.msra.mxu0 %v515
    %708 = vmatprep.mubr.bf16.mxu0 %v74
    %709 = vmatmul.mubr.bf16.gmra.mrb[0].mxu0 %v73
    %v710 = vpop.f32.mrb[0].mxu0
    %v711 = vadd.f32 %v671, %v710
    %v712 = vpop.f32.mrb[0].mxu0
    %v713 = vpop.f32.mrb[0].mxu0
    %v714 = vpop.f32.mrb[0].mxu0
    %715 = vdwg.mxu0
    %716 = vmatprep.subr.bf16.mxu0 0
    %717 = vmatpush1.bf16.msra.mxu0 %v516
    %718 = vmatprep.subr.bf16.mxu0 0
    %719 = vmatpush1.bf16.msra.mxu0 %v517
    %720 = vmatprep.subr.bf16.mxu0 0
    %721 = vmatpush1.bf16.msra.mxu0 %v518
    %722 = vmatprep.subr.bf16.mxu0 0
    %723 = vmatpush1.bf16.msra.mxu0 %v519
    %724 = vmatprep.subr.bf16.mxu0 0
    %725 = vmatpush1.bf16.msra.mxu0 %v520
    %726 = vmatprep.subr.bf16.mxu0 0
    %727 = vmatpush1.bf16.msra.mxu0 %v521
    %728 = vmatprep.subr.bf16.mxu0 0
    %729 = vmatpush1.bf16.msra.mxu0 %v522
    %730 = vmatprep.subr.bf16.mxu0 0
    %731 = vmatpush1.bf16.msra.mxu0 %v523
    %732 = vmatprep.subr.bf16.mxu0 0
    %733 = vmatpush1.bf16.msra.mxu0 %v524
    %734 = vmatprep.subr.bf16.mxu0 0
    %735 = vmatpush1.bf16.msra.mxu0 %v525
    %736 = vmatprep.subr.bf16.mxu0 0
    %737 = vmatpush1.bf16.msra.mxu0 %v526
    %738 = vmatprep.subr.bf16.mxu0 0
    %739 = vmatpush1.bf16.msra.mxu0 %v527
    %740 = vmatprep.subr.bf16.mxu0 0
    %741 = vmatpush1.bf16.msra.mxu0 %v528
    %742 = vmatprep.subr.bf16.mxu0 0
    %743 = vmatpush1.bf16.msra.mxu0 %v529
    %744 = vmatprep.subr.bf16.mxu0 0
    %745 = vmatpush1.bf16.msra.mxu0 %v530
    %746 = vmatprep.subr.bf16.mxu0 0
    %747 = vmatpush1.bf16.msra.mxu0 %v531
    %748 = vmatprep.mubr.bf16.mxu0 %v76
    %749 = vmatmul.mubr.bf16.gmra.mrb[0].mxu0 %v75
    %v750 = vpop.f32.mrb[0].mxu0
    %v751 = vadd.f32 %v711, %v750
    %v752 = vpop.f32.mrb[0].mxu0
    %v753 = vpop.f32.mrb[0].mxu0
    %v754 = vpop.f32.mrb[0].mxu0
    %755 = vdwg.mxu0
    %v756 = vmax.f32 %v751, 0.0
    %v757 = vmul.f32 %v756, %v756
    %758 = vadd.xlane.f32.xlu0 %v757
    %v759 = vpop.xlane.xlu0 %758
    %v760 = vmax.f32 %v759, 1e-24
    %v761 = vrsqrt.pop %v760
    %v762 = vmul.f32 %v756, %v761
    %v763 = vpack.c.bf16 %v762, %v762
    %v764 = vld [vmem:[#allocation7] sm:$0xf]
    %v765 = vld [vmem:[#allocation7 + $0x4] sm:$0xf]
    %v766 = vld [vmem:[#allocation7 + $0x8] sm:$0xf]
    %v767 = vld [vmem:[#allocation7 + $0xc] sm:$0xf]
    %v768 = vld [vmem:[#allocation7 + $0x10] sm:$0xf]
    %v769 = vld [vmem:[#allocation7 + $0x14] sm:$0xf]
    %v770 = vld [vmem:[#allocation7 + $0x18] sm:$0xf]
    %v771 = vld [vmem:[#allocation7 + $0x1c] sm:$0xf]
    %v772 = vld [vmem:[#allocation7 + $0x20] sm:$0xf]
    %v773 = vld [vmem:[#allocation7 + $0x24] sm:$0xf]
    %v774 = vld [vmem:[#allocation7 + $0x28] sm:$0xf]
    %v775 = vld [vmem:[#allocation7 + $0x2c] sm:$0xf]
    %v776 = vld [vmem:[#allocation7 + $0x30] sm:$0xf]
    %v777 = vld [vmem:[#allocation7 + $0x34] sm:$0xf]
    %v778 = vld [vmem:[#allocation7 + $0x38] sm:$0xf]
    %v779 = vld [vmem:[#allocation7 + $0x3c] sm:$0xf]
    %v780 = vld [vmem:[%s4] sm:$0x1]
    %v782 = vlaneseq
    %v783 = vshrl.u32 %v782, 7
    %v784 = vsub.s32 0, %v783
    %v785 = vrot.slane %v780, %v784
    %v803 = vunpack.c.l.b16 %v764
    %v804 = vunpack.c.l.b16 %v765
    %v805 = vunpack.c.l.b16 %v766
    %v806 = vunpack.c.l.b16 %v767
    %v807 = vunpack.c.l.b16 %v768
    %v808 = vunpack.c.l.b16 %v769
    %v809 = vunpack.c.l.b16 %v770
    %v810 = vunpack.c.l.b16 %v771
    %v811 = vunpack.c.l.b16 %v772
    %v812 = vunpack.c.l.b16 %v773
    %v813 = vunpack.c.l.b16 %v774
    %v814 = vunpack.c.l.b16 %v775
    %v815 = vunpack.c.l.b16 %v776
    %v816 = vunpack.c.l.b16 %v777
    %v817 = vunpack.c.l.b16 %v778
    %v818 = vunpack.c.l.b16 %v779
    %v819 = vpack.c.b16 %v804, %v803
    %v820 = vpack.c.b16 %v806, %v805
    %v821 = vpack.c.b16 %v808, %v807
    %v822 = vpack.c.b16 %v810, %v809
    %v823 = vpack.c.b16 %v812, %v811
    %v824 = vpack.c.b16 %v814, %v813
    %v825 = vpack.c.b16 %v816, %v815
    %v826 = vpack.c.b16 %v818, %v817
    %835 = vmatprep.subr.bf16.mxu0 0
    %836 = vmatpush1.bf16.msra.mxu0 %v819
    %837 = vmatprep.subr.bf16.mxu0 0
    %838 = vmatpush1.bf16.msra.mxu0 %v820
    %839 = vmatprep.subr.bf16.mxu0 0
    %840 = vmatpush1.bf16.msra.mxu0 %v821
    %841 = vmatprep.subr.bf16.mxu0 0
    %842 = vmatpush1.bf16.msra.mxu0 %v822
    %843 = vmatprep.subr.bf16.mxu0 0
    %844 = vmatpush1.bf16.msra.mxu0 %v823
    %845 = vmatprep.subr.bf16.mxu0 0
    %846 = vmatpush1.bf16.msra.mxu0 %v824
    %847 = vmatprep.subr.bf16.mxu0 0
    %848 = vmatpush1.bf16.msra.mxu0 %v825
    %849 = vmatprep.subr.bf16.mxu0 0
    %850 = vmatpush1.bf16.msra.mxu0 %v826
    %851 = vmatprep.subr.bf16.mxu0 0
    %852 = vmatpush1.bf16.msra.mxu0 0
    %853 = vmatprep.subr.bf16.mxu0 0
    %854 = vmatpush1.bf16.msra.mxu0 0
    %855 = vmatprep.subr.bf16.mxu0 0
    %856 = vmatpush1.bf16.msra.mxu0 0
    %857 = vmatprep.subr.bf16.mxu0 0
    %858 = vmatpush1.bf16.msra.mxu0 0
    %859 = vmatprep.subr.bf16.mxu0 0
    %860 = vmatpush1.bf16.msra.mxu0 0
    %861 = vmatprep.subr.bf16.mxu0 0
    %862 = vmatpush1.bf16.msra.mxu0 0
    %863 = vmatprep.subr.bf16.mxu0 0
    %864 = vmatpush1.bf16.msra.mxu0 0
    %865 = vmatprep.subr.bf16.mxu0 0
    %866 = vmatpush1.bf16.msra.mxu0 0
    %867 = vmatprep.mubr.bf16.mxu0 0
    %868 = vmatmul.mubr.bf16.gmra.mrb[0].mxu0 %v763
    %v869 = vpop.f32.mrb[0].mxu0
    %v870 = vadd.f32 %v785, %v869
    %v871 = vpop.f32.mrb[0].mxu0
    %v872 = vpop.f32.mrb[0].mxu0
    %v873 = vpop.f32.mrb[0].mxu0
    %874 = vdwg.mxu0
    %875 = vst [vmem:[#allocation8] sm:$0xff] %v870
    // Predicated region
    $region34: #{tpu_custom_call.1} parent=1 // pred_check
      _
    $region35: #{tpu_custom_call.1} parent=1 // pred_check_branch
      %877 = sbr.rel (0) target = $region37
    $region36: #{tpu_custom_call.1} parent=1 // pred_region
      %s879 = ssub.s32 128, 128
      %880 = vsyncadd [#allocation4], %s879
      %s882 = sshll.u32 [#allocation8], 4
      %s883 = int_to_ptr.vmem [resolvable:$true] %s882
      %885 = dma.vmem_to_hbm [thread:$0]  %s883, 128, %s5, [#allocation4]
    $region37: #{tpu_custom_call.1} parent=1 // pred_fallthru
      _
    // Predicated region
    $region38: #{tpu_custom_call.1} parent=1 // pred_check
      _
    $region39: #{tpu_custom_call.1} parent=1 // pred_check_branch
      %887 = sbr.rel (0) target = $region41
    $region40: #{tpu_custom_call.1} parent=1 // pred_region
      %888 = dma.done [#allocation4], 128
    $region41: #{tpu_custom_call.1} parent=1 // pred_fallthru
      _
    %889 = vsyncpa [#allocation3], 1
    %890 = vsyncpa [#allocation6], 1
    %891 = vsyncpa [#allocation4], 1

</llo_original>
